<compile_context>
chip_gen: v5e
topology: v5e:2x2
jax: 0.10.0
libtpu: 0.0.40
codegen_flags: <defaults>
</compile_context>

<pallas_src>
import functools

import numpy as np

import jax
import jax.numpy as jnp
from jax.experimental import pallas as pl
from jax.experimental.pallas import tpu as pltpu


def _masked_bn_kernel(x_ref, mask_ref, gamma_ref, beta_ref, o_ref, *, eps):
    """One feature tile: masked per-feature stats + normalize + zero-scatter."""
    x = x_ref[...].astype(jnp.float32)                       # (Np, TF)
    m = (mask_ref[...] > 0.0).astype(jnp.float32)            # (Np, 1) row gate

    cnt = jnp.maximum(jnp.sum(m), 1.0)                       # selected rows (>=1)
    inv_cnt = 1.0 / cnt

    # Per-feature mean over selected rows.
    mean = jnp.sum(x * m, axis=0, keepdims=True) * inv_cnt   # (1, TF)

    # Centered + masked; unselected rows contribute nothing to the variance.
    diff = (x - mean) * m                                     # (Np, TF)

    # Biased variance (what BatchNorm1d normalizes with in training mode).
    var = jnp.sum(diff * diff, axis=0, keepdims=True) * inv_cnt  # (1, TF)

    scale = gamma_ref[...].astype(jnp.float32) * jax.lax.rsqrt(var + eps)
    beta = beta_ref[...].astype(jnp.float32)
    # diff is already zero on unselected rows; gate beta by the mask too so
    # those rows come out exactly zero (matches the torch.zeros scatter).
    o_ref[...] = (diff * scale + beta * m).astype(o_ref.dtype)


def _pick_tile_f(fp, np_rows, itemsize):
    """Largest 128-multiple tile dividing fp whose double-buffered x+out tiles
    stay under a ~24 MiB budget (safe on v5e 16 MiB scoped default once we
    raise the limit, and well under v7x's 64 MiB physical VMEM)."""
    budget = 24 << 20
    for t in (512, 256, 128):
        if fp % t == 0 and 2 * 2 * np_rows * t * itemsize <= budget:
            return t
    return 128


def masked_batch_norm_1d(x, mask, gamma, beta, eps=1e-5):
    """Forward pass of MaskedBatchNorm1d.

    x: (N, F), mask: (N,) (mask > 0 selects the row), gamma/beta: (F,).
    Returns (N, F) in x.dtype: normalized selected rows, zeros elsewhere.
    """
    N, F = x.shape
    pad_n = (-N) % 8        # sublane multiple
    pad_f = (-F) % 128      # lane multiple (lane-dense stores)
    Np, Fp = N + pad_n, F + pad_f

    # Only materialize pad copies when the shape actually requires them.
    x_in = jnp.pad(x, ((0, pad_n), (0, pad_f))) if (pad_n or pad_f) else x
    mask_in = mask.astype(jnp.float32)
    if pad_n:
        mask_in = jnp.pad(mask_in, (0, pad_n))          # padded rows -> unselected
    mask_in = mask_in.reshape(Np, 1)
    gamma_in = gamma.astype(jnp.float32)
    beta_in = beta.astype(jnp.float32)
    if pad_f:
        gamma_in = jnp.pad(gamma_in, (0, pad_f))
        beta_in = jnp.pad(beta_in, (0, pad_f))
    gamma_in = gamma_in.reshape(1, Fp)
    beta_in = beta_in.reshape(1, Fp)

    itemsize = np.dtype(x.dtype).itemsize
    tile_f = _pick_tile_f(Fp, Np, itemsize)
    grid = (pl.cdiv(Fp, tile_f),)

    # Double-buffered x + out tiles, plus mask / gamma / beta, plus headroom.
    tile_bytes = 2 * 2 * Np * tile_f * itemsize
    misc_bytes = 2 * Np * 4 + 2 * 2 * tile_f * 4 * 2
    vmem_limit = int(min(max(tile_bytes + misc_bytes + (2 << 20), 4 << 20), 64 << 20))

    out = pl.pallas_call(
        functools.partial(_masked_bn_kernel, eps=float(eps)),
        out_shape=jax.ShapeDtypeStruct((Np, Fp), x.dtype),
        grid=grid,
        in_specs=[
            pl.BlockSpec((Np, tile_f), lambda j: (0, j)),   # x column slab
            pl.BlockSpec((Np, 1), lambda j: (0, 0)),        # mask (same block every step)
            pl.BlockSpec((1, tile_f), lambda j: (0, j)),    # gamma
            pl.BlockSpec((1, tile_f), lambda j: (0, j)),    # beta
        ],
        out_specs=pl.BlockSpec((Np, tile_f), lambda j: (0, j)),
        compiler_params=pltpu.CompilerParams(
            dimension_semantics=("parallel",),
            vmem_limit_bytes=vmem_limit,
        ),
    )(x_in, mask_in, gamma_in, beta_in)

    if pad_n or pad_f:
        out = out[:N, :F]
    return out


def reference(x, mask, gamma, beta, eps=1e-5):
    """NumPy reference mirroring the PyTorch module (training-mode BN)."""
    x = np.asarray(x, dtype=np.float64)
    mask = np.asarray(mask)
    gamma = np.asarray(gamma, dtype=np.float64)
    beta = np.asarray(beta, dtype=np.float64)
    sel = mask > 0
    xi = x[sel]
    mean = xi.mean(axis=0)
    var = xi.var(axis=0)                       # biased variance
    yi = (xi - mean) / np.sqrt(var + eps) * gamma + beta
    y = np.zeros_like(x)
    y[sel] = yi
    return y


def _check(batch, feature_n, key):
    kx, kg, kb = jax.random.split(key, 3)
    x = jax.random.normal(kx, (batch, feature_n), jnp.float32)
    # Non-binary mask: rows where value == 0 are skipped (mask > 0 selects).
    mask = (jnp.arange(batch) % 3).astype(jnp.float32)
    gamma = 1.0 + 0.1 * jax.random.normal(kg, (feature_n,), jnp.float32)
    beta = 0.1 * jax.random.normal(kb, (feature_n,), jnp.float32)

    out = masked_batch_norm_1d(x, mask, gamma, beta)
    out = jax.block_until_ready(out)

    ref = reference(x, mask, gamma, beta)
    assert out.shape == (batch, feature_n)
    assert np.allclose(np.asarray(out), ref, atol=1e-4, rtol=1e-4), "mismatch vs reference"
    # Rows with mask == 0 must be exactly zero (scatter into torch.zeros).
    assert np.all(np.asarray(out)[np.asarray(mask) == 0] == 0.0)


if __name__ == "__main__":
    key = jax.random.PRNGKey(0)
    k0, k1 = jax.random.split(key)

    # Aligned shapes: zero-copy wrapper path, feature grid of 3 tiles.
    _check(batch=16, feature_n=384, key=k0)
    # Unaligned shapes: exercises the guarded pad / slice path.
    _check(batch=13, feature_n=40, key=k1)

    print("KERNEL_OK")
</pallas_src>

<mosaic_0001>
module attributes {stable_mosaic.version = 11 : i64} {
  func.func @_masked_bn_kernel(%arg0: i32, %arg1: memref<16x128xf32, #tpu.memory_space<vmem>>, %arg2: memref<16x1xf32, #tpu.memory_space<vmem>>, %arg3: memref<1x128xf32, #tpu.memory_space<vmem>>, %arg4: memref<1x128xf32, #tpu.memory_space<vmem>>, %arg5: memref<16x128xf32, #tpu.memory_space<vmem>>) attributes {dimension_semantics = [#tpu.dimension_semantics<parallel>], iteration_bounds = array<i64: 3>, scalar_prefetch = 0 : i64, scratch_operands = 0 : i64, tpu.core_type = #tpu.core_type<tc>, window_params = [{transform_indices = @transform_0, window_bounds = array<i64: 16, 128>}, {pipeline_mode = #tpu.pipeline_mode<synchronous>, transform_indices = @transform_1, window_bounds = array<i64: 16, 1>}, {transform_indices = @transform_2, window_bounds = array<i64: 1, 128>}, {transform_indices = @transform_3, window_bounds = array<i64: 1, 128>}, {transform_indices = @transform_4, window_bounds = array<i64: 16, 128>}]} {
    %c0 = arith.constant 0 : index
    %c0_0 = arith.constant 0 : index
    %0 = vector.load %arg1[%c0, %c0_0] : memref<16x128xf32, #tpu.memory_space<vmem>>, vector<16x128xf32>
    %c0_1 = arith.constant 0 : index
    %c0_2 = arith.constant 0 : index
    %1 = vector.load %arg2[%c0_1, %c0_2] : memref<16x1xf32, #tpu.memory_space<vmem>>, vector<16x1xf32>
    %cst = arith.constant 0.000000e+00 : f32
    %2 = vector.broadcast %cst : f32 to vector<16x1xf32>
    %3 = arith.cmpf ogt, %1, %2 : vector<16x1xf32>
    %4 = arith.extui %3 : vector<16x1xi1> to vector<16x1xi32>
    %5 = arith.sitofp %4 : vector<16x1xi32> to vector<16x1xf32>
    %6 = vector.shape_cast %5 : vector<16x1xf32> to vector<1x16x1xf32>
    %cst_3 = arith.constant dense<0.000000e+00> : vector<1xf32>
    %7 = vector.multi_reduction <add>, %6, %cst_3 [1, 2] : vector<1x16x1xf32> to vector<1xf32>
    %8 = vector.shape_cast %7 : vector<1xf32> to vector<1x1x1xf32>
    %9 = vector.extract %8[0, 0, 0] : f32 from vector<1x1x1xf32>
    %cst_4 = arith.constant 1.000000e+00 : f32
    %10 = arith.maximumf %9, %cst_4 : f32
    %cst_5 = arith.constant 1.000000e+00 : f32
    %11 = arith.divf %cst_5, %10 : f32
    %12 = vector.broadcast %5 : vector<16x1xf32> to vector<16x128xf32>
    %13 = arith.mulf %0, %12 : vector<16x128xf32>
    %cst_6 = arith.constant dense<0.000000e+00> : vector<128xf32>
    %14 = vector.multi_reduction <add>, %13, %cst_6 [0] : vector<16x128xf32> to vector<128xf32>
    %15 = vector.shape_cast %14 : vector<128xf32> to vector<1x128xf32>
    %16 = vector.broadcast %11 : f32 to vector<1x128xf32>
    %17 = arith.mulf %15, %16 : vector<1x128xf32>
    %18 = vector.broadcast %17 : vector<1x128xf32> to vector<16x128xf32>
    %19 = arith.subf %0, %18 : vector<16x128xf32>
    %20 = vector.broadcast %5 : vector<16x1xf32> to vector<16x128xf32>
    %21 = arith.mulf %19, %20 : vector<16x128xf32>
    %22 = arith.mulf %21, %21 : vector<16x128xf32>
    %cst_7 = arith.constant dense<0.000000e+00> : vector<128xf32>
    %23 = vector.multi_reduction <add>, %22, %cst_7 [0] : vector<16x128xf32> to vector<128xf32>
    %24 = vector.shape_cast %23 : vector<128xf32> to vector<1x128xf32>
    %25 = vector.broadcast %11 : f32 to vector<1x128xf32>
    %26 = arith.mulf %24, %25 : vector<1x128xf32>
    %c0_8 = arith.constant 0 : index
    %c0_9 = arith.constant 0 : index
    %27 = vector.load %arg3[%c0_8, %c0_9] : memref<1x128xf32, #tpu.memory_space<vmem>>, vector<1x128xf32>
    %cst_10 = arith.constant 9.99999974E-6 : f32
    %28 = vector.broadcast %cst_10 : f32 to vector<1x128xf32>
    %29 = arith.addf %26, %28 : vector<1x128xf32>
    %30 = math.rsqrt %29 : vector<1x128xf32>
    %31 = arith.mulf %27, %30 : vector<1x128xf32>
    %c0_11 = arith.constant 0 : index
    %c0_12 = arith.constant 0 : index
    %32 = vector.load %arg4[%c0_11, %c0_12] : memref<1x128xf32, #tpu.memory_space<vmem>>, vector<1x128xf32>
    %33 = vector.broadcast %31 : vector<1x128xf32> to vector<16x128xf32>
    %34 = arith.mulf %21, %33 : vector<16x128xf32>
    %35 = vector.broadcast %32 : vector<1x128xf32> to vector<16x128xf32>
    %36 = vector.broadcast %5 : vector<16x1xf32> to vector<16x128xf32>
    %37 = arith.mulf %35, %36 : vector<16x128xf32>
    %38 = arith.addf %34, %37 : vector<16x128xf32>
    %c0_13 = arith.constant 0 : index
    %c0_14 = arith.constant 0 : index
    %39 = vector.load %arg5[%c0_13, %c0_14] : memref<16x128xf32, #tpu.memory_space<vmem>>, vector<16x128xf32>
    tpu.vector_store %arg5[%c0_13, %c0_14], %38 {strides = array<i32>} : memref<16x128xf32, #tpu.memory_space<vmem>>, vector<16x128xf32>,
    return
  }
  func.func @transform_0(%arg0: i32) -> (i32, i32) {
    %c0_i32 = arith.constant 0 : i32
    %c0_i32_0 = arith.constant 0 : i32
    return %c0_i32, %arg0 : i32, i32
  }
  func.func @transform_1(%arg0: i32) -> (i32, i32) {
    %c0_i32 = arith.constant 0 : i32
    %c0_i32_0 = arith.constant 0 : i32
    %c0_i32_1 = arith.constant 0 : i32
    return %c0_i32, %c0_i32_0 : i32, i32
  }
  func.func @transform_2(%arg0: i32) -> (i32, i32) {
    %c0_i32 = arith.constant 0 : i32
    %c0_i32_0 = arith.constant 0 : i32
    return %c0_i32, %arg0 : i32, i32
  }
  func.func @transform_3(%arg0: i32) -> (i32, i32) {
    %c0_i32 = arith.constant 0 : i32
    %c0_i32_0 = arith.constant 0 : i32
    return %c0_i32, %arg0 : i32, i32
  }
  func.func @transform_4(%arg0: i32) -> (i32, i32) {
    %c0_i32 = arith.constant 0 : i32
    %c0_i32_0 = arith.constant 0 : i32
    return %c0_i32, %arg0 : i32, i32
  }
}

</mosaic_0001>

<llo_original>
// kernel: tpu_custom_call.1
$region0: #{tpu_custom_call.1}
  #allocation0 [shape = 'u32[]', space=smem, size = 0x4, offset = 0x4, fixed_abs, tag = 'smem constant byte address 0x4 - core index']
  #allocation1 [shape = 'u32[72,128]{1,0:T(1,128)}', space=vmem, size = 0x9000, scoped, tag = 'internal scratch']
  %s0 = inlined_call_operand.hbm [shape: f32[16,384], index: 0, kind: input, shape index: {}]
  %s1 = inlined_call_operand.vmem [shape: f32[16,1], index: 1, kind: input, shape index: {}]
  %s2 = inlined_call_operand.vmem [shape: f32[1,384], index: 2, kind: input, shape index: {}]
  %s3 = inlined_call_operand.vmem [shape: f32[1,384], index: 3, kind: input, shape index: {}]
  %s4 = inlined_call_operand.hbm [shape: f32[16,384], index: 4, kind: output, shape index: {}]
  %s5 = sld [smem:[#allocation0]]
  $region53: #{tpu_custom_call.1} parent=0
    _
  %s7 = ssub.s32 1, %s5
  %s8 = scalar_select 0, %s7, %s5
  $region1: #{tpu_custom_call.1} parent=0
    #allocation2 [shape = 'u8[16384]{0}', space=vmem, size = 0x4000, scoped, tag = 'input window, operand 0']
    #allocation3 [shape = 's32[2]{0}', space=sflag, size = 0x8, scoped, tag = 'scoped memory for tpu_custom_call.1']
    #allocation4 [shape = 's32[2]{0}', space=sflag, size = 0x8, scoped, tag = 'scoped memory for tpu_custom_call.1']
    #allocation5 [shape = 'u8[16384]{0}', space=vmem, size = 0x4000, scoped, tag = 'output window, operand 0']
    %9 = vsyncpa [#allocation3], 0
    %s10 = scalar_lea.sflag [#allocation3], 1
    %11 = vsyncpa %s10, 0
    %12 = vsyncpa [#allocation4], 0
    %s13 = scalar_lea.sflag [#allocation4], 1
    %14 = vsyncpa %s13, 0
    loop: start=0, step=1, limit=5
    $region2: #{tpu_custom_call.1} parent=1 // loop_pre_header
      _
    $region3: #{tpu_custom_call.1} parent=1 // loop_header
      %s16 = sphi 0, %s20
      %p17 = scmp.ge.s32.totalorder %s16, 5
      %s26 = sphi 0, %s28
      %s29 = sphi 0, %s26
      %s30 = sphi 0, %s29
      %s46 = sphi 0, %s30
      %s50 = sphi 0, %s50
      %s52 = sphi 0, %s50
      %s53 = sphi 0, %s52
      %s67 = sphi 0, %s53
      %s73 = sphi 0, %s75
      %s76 = sphi 0, %s73
      %s77 = sphi 0, %s76
      %s93 = sphi 0, %s77
      %s99 = sphi 0, %s101
      %s102 = sphi 0, %s99
      %s103 = sphi 0, %s102
      %s119 = sphi 0, %s103
      %s125 = sphi 0, %s127
      %s128 = sphi 0, %s125
      %s129 = sphi 0, %s128
      %s145 = sphi 0, %s129
    $region4: #{tpu_custom_call.1} parent=1 // loop_header_branch
      %19 = sbr.rel (%p17) target = $region8
    $region5: #{tpu_custom_call.1} parent=1 // loop_body
      %s21 = ssub.s32 %s16, 1
      %s22 = ssub.s32 %s16, 2
      %s23 = sadd.s32 %s16, 1
      %s24 = ssub.s32 %s16, %s23
      %p25 = scmp.eq.s32.totalorder %s24, 0
      %s27 = sadd.s32 %s26, 1
      %s28 = scalar_select %p25, %s26, %s27
      %p31 = pneg %p25
      %p32 = scmp.eq.s32.totalorder %s16, 2
      %p33 = por %p31, %p32
      %p34 = scmp.ne.s32.totalorder %s26, %s29
      %p35 = scmp.eq.s32.totalorder %s16, 0
      %p36 = por %p34, %p35
      %p37 = scmp.ne.s32.totalorder %s26, %s29
      %p38 = scmp.eq.s32.totalorder %s21, 2
      %p39 = por %p37, %p38
      %p40 = scmp.ne.s32.totalorder %s29, %s30
      %p41 = scmp.eq.s32.totalorder %s21, 0
      %p42 = por %p40, %p41
      %p43 = scmp.ne.s32.totalorder %s29, %s30
      %p44 = scmp.eq.s32.totalorder %s22, 2
      %p45 = por %p43, %p44
      %p47 = scmp.ne.s32.totalorder %s30, %s46
      %p48 = scmp.eq.s32.totalorder %s22, 0
      %p49 = por %p47, %p48
      %s51 = sadd.s32 %s50, 1
      %p54 = scmp.eq.s32.totalorder %s16, 2
      %p55 = scmp.ne.s32.totalorder %s50, %s52
      %p56 = scmp.eq.s32.totalorder %s16, 0
      %p57 = por %p55, %p56
      %p58 = scmp.ne.s32.totalorder %s50, %s52
      %p59 = scmp.eq.s32.totalorder %s21, 2
      %p60 = por %p58, %p59
      %p61 = scmp.ne.s32.totalorder %s52, %s53
      %p62 = scmp.eq.s32.totalorder %s21, 0
      %p63 = por %p61, %p62
      %p64 = scmp.ne.s32.totalorder %s52, %s53
      %p65 = scmp.eq.s32.totalorder %s22, 2
      %p66 = por %p64, %p65
      %p68 = scmp.ne.s32.totalorder %s53, %s67
      %p69 = scmp.eq.s32.totalorder %s22, 0
      %p70 = por %p68, %p69
      %s71 = ssub.s32 %s16, %s23
      %p72 = scmp.eq.s32.totalorder %s71, 0
      %s74 = sadd.s32 %s73, 1
      %s75 = scalar_select %p72, %s73, %s74
      %p78 = pneg %p72
      %p79 = scmp.eq.s32.totalorder %s16, 2
      %p80 = por %p78, %p79
      %p81 = scmp.ne.s32.totalorder %s73, %s76
      %p82 = scmp.eq.s32.totalorder %s16, 0
      %p83 = por %p81, %p82
      %p84 = scmp.ne.s32.totalorder %s73, %s76
      %p85 = scmp.eq.s32.totalorder %s21, 2
      %p86 = por %p84, %p85
      %p87 = scmp.ne.s32.totalorder %s76, %s77
      %p88 = scmp.eq.s32.totalorder %s21, 0
      %p89 = por %p87, %p88
      %p90 = scmp.ne.s32.totalorder %s76, %s77
      %p91 = scmp.eq.s32.totalorder %s22, 2
      %p92 = por %p90, %p91
      %p94 = scmp.ne.s32.totalorder %s77, %s93
      %p95 = scmp.eq.s32.totalorder %s22, 0
      %p96 = por %p94, %p95
      %s97 = ssub.s32 %s16, %s23
      %p98 = scmp.eq.s32.totalorder %s97, 0
      %s100 = sadd.s32 %s99, 1
      %s101 = scalar_select %p98, %s99, %s100
      %p104 = pneg %p98
      %p105 = scmp.eq.s32.totalorder %s16, 2
      %p106 = por %p104, %p105
      %p107 = scmp.ne.s32.totalorder %s99, %s102
      %p108 = scmp.eq.s32.totalorder %s16, 0
      %p109 = por %p107, %p108
      %p110 = scmp.ne.s32.totalorder %s99, %s102
      %p111 = scmp.eq.s32.totalorder %s21, 2
      %p112 = por %p110, %p111
      %p113 = scmp.ne.s32.totalorder %s102, %s103
      %p114 = scmp.eq.s32.totalorder %s21, 0
      %p115 = por %p113, %p114
      %p116 = scmp.ne.s32.totalorder %s102, %s103
      %p117 = scmp.eq.s32.totalorder %s22, 2
      %p118 = por %p116, %p117
      %p120 = scmp.ne.s32.totalorder %s103, %s119
      %p121 = scmp.eq.s32.totalorder %s22, 0
      %p122 = por %p120, %p121
      %s123 = ssub.s32 %s16, %s23
      %p124 = scmp.eq.s32.totalorder %s123, 0
      %s126 = sadd.s32 %s125, 1
      %s127 = scalar_select %p124, %s125, %s126
      %p130 = pneg %p124
      %p131 = scmp.eq.s32.totalorder %s16, 2
      %p132 = por %p130, %p131
      %p133 = scmp.ne.s32.totalorder %s125, %s128
      %p134 = scmp.eq.s32.totalorder %s16, 0
      %p135 = por %p133, %p134
      %p136 = scmp.ne.s32.totalorder %s125, %s128
      %p137 = scmp.eq.s32.totalorder %s21, 2
      %p138 = por %p136, %p137
      %p139 = scmp.ne.s32.totalorder %s128, %s129
      %p140 = scmp.eq.s32.totalorder %s21, 0
      %p141 = por %p139, %p140
      %p142 = scmp.ne.s32.totalorder %s128, %s129
      %p143 = scmp.eq.s32.totalorder %s22, 2
      %p144 = por %p142, %p143
      %p146 = scmp.ne.s32.totalorder %s129, %s145
      %p147 = scmp.eq.s32.totalorder %s22, 0
      %p148 = por %p146, %p147
      %p149 = scmp.le.s32.totalorder 1, %s16
      %p150 = scmp.lt.s32.totalorder %s16, 4
      %p151 = pnand %p149, %p150
      %p152 = pneg %p151
      // Predicated region
      $region9: #{tpu_custom_call.1} parent=5 // pred_check
        _
      $region10: #{tpu_custom_call.1} parent=5 // pred_check_branch
        %154 = sbr.rel (%p151) target = $region12
      $region11: #{tpu_custom_call.1} parent=5 // pred_region
        %s155 = ssub.s32 %s16, 1
        // Predicated region
        $region13: #{tpu_custom_call.1} parent=11 // pred_check
          %p156 = pneg %p63
        $region14: #{tpu_custom_call.1} parent=11 // pred_check_branch
          %158 = sbr.rel (%p156) target = $region16
        $region15: #{tpu_custom_call.1} parent=11 // pred_region
          _
        $region16: #{tpu_custom_call.1} parent=11 // pred_fallthru
          _
      $region12: #{tpu_custom_call.1} parent=5 // pred_fallthru
        _
      %p159 = scmp.lt.s32.totalorder %s16, 3
      // Predicated region
      $region17: #{tpu_custom_call.1} parent=5 // pred_check
        %p160 = pneg %p159
      $region18: #{tpu_custom_call.1} parent=5 // pred_check_branch
        %162 = sbr.rel (%p160) target = $region20
      $region19: #{tpu_custom_call.1} parent=5 // pred_region
        // Predicated region
        $region21: #{tpu_custom_call.1} parent=19 // pred_check
          %p163 = pneg %p36
        $region22: #{tpu_custom_call.1} parent=19 // pred_check_branch
          %165 = sbr.rel (%p163) target = $region24
        $region23: #{tpu_custom_call.1} parent=19 // pred_region
          %s166 = sand.u32 %s26, 1
          %s167 = scalar_lea.sflag [#allocation3], %s166
          %s168 = sand.u32 %s26, 1
          %s169 = smul.addr %s168, 16
          %s170 = scalar_lea.vmem [#allocation2], %s169
          %172 = vsyncadd %s167, 0
          %s173 = smul.addr %s16, 8
          %s174 = scalar_lea.hbm %s0, %s173
          %s175 = sshll.u32 %s174, 4
          %s176 = int_to_ptr.hbm [resolvable:$true] %s175
          %s177 = sshll.u32 %s170, 4
          %s178 = int_to_ptr.vmem [resolvable:$true] %s177
          %183 = dma.hbm_to_vmem [thread:$0]  %s176, 256, %s178, %s167, 384, 128, 8
        $region24: #{tpu_custom_call.1} parent=19 // pred_fallthru
          _
        // Predicated region
        $region25: #{tpu_custom_call.1} parent=19 // pred_check
          %p184 = pneg %p83
        $region26: #{tpu_custom_call.1} parent=19 // pred_check_branch
          %186 = sbr.rel (%p184) target = $region28
        $region27: #{tpu_custom_call.1} parent=19 // pred_region
          %p187 = scmp.lt.s32.totalorder %s16, 2
          %s188 = scalar_select %p187, %s16, 2
          %s189 = scalar_lea.vmem %s2, %s188
        $region28: #{tpu_custom_call.1} parent=19 // pred_fallthru
          _
        // Predicated region
        $region29: #{tpu_custom_call.1} parent=19 // pred_check
          %p190 = pneg %p109
        $region30: #{tpu_custom_call.1} parent=19 // pred_check_branch
          %192 = sbr.rel (%p190) target = $region32
        $region31: #{tpu_custom_call.1} parent=19 // pred_region
          %p193 = scmp.lt.s32.totalorder %s16, 2
          %s194 = scalar_select %p193, %s16, 2
          %s195 = scalar_lea.vmem %s3, %s194
        $region32: #{tpu_custom_call.1} parent=19 // pred_fallthru
          _
      $region20: #{tpu_custom_call.1} parent=5 // pred_fallthru
        _
      %p196 = scmp.le.s32.totalorder 1, %s16
      %p197 = scmp.lt.s32.totalorder %s16, 4
      %p198 = pnand %p196, %p197
      %p199 = pneg %p198
      // Predicated region
      $region33: #{tpu_custom_call.1} parent=5 // pred_check
        _
      $region34: #{tpu_custom_call.1} parent=5 // pred_check_branch
        %201 = sbr.rel (%p198) target = $region36
      $region35: #{tpu_custom_call.1} parent=5 // pred_region
        %s202 = ssub.s32 %s16, 1
        %s203 = sand.u32 %s29, 1
        %s204 = scalar_lea.sflag [#allocation3], %s203
        %s205 = sand.u32 %s29, 1
        %s206 = smul.addr %s205, 16
        %s207 = scalar_lea.vmem [#allocation2], %s206
        // Predicated region
        $region37: #{tpu_custom_call.1} parent=35 // pred_check
          %p208 = pneg %p42
        $region38: #{tpu_custom_call.1} parent=35 // pred_check_branch
          %210 = sbr.rel (%p208) target = $region40
        $region39: #{tpu_custom_call.1} parent=35 // pred_region
          %212 = dma.done %s204, 256
        $region40: #{tpu_custom_call.1} parent=35 // pred_fallthru
          _
        %s213 = sand.u32 %s29, 1
        %s214 = scalar_lea.sflag [#allocation3], %s213
        %s215 = sand.u32 %s29, 1
        %s216 = smul.addr %s215, 16
        %s217 = scalar_lea.vmem [#allocation2], %s216
        %p218 = pneg %p42
        %p219 = pneg %p39
        %p220 = pneg %p63
        %p221 = pneg %p60
        %p222 = scmp.lt.s32.totalorder %s21, 2
        %s223 = scalar_select %p222, %s21, 2
        %s224 = scalar_lea.vmem %s2, %s223
        %p225 = pneg %p89
        %p226 = pneg %p86
        %p227 = scmp.lt.s32.totalorder %s21, 2
        %s228 = scalar_select %p227, %s21, 2
        %s229 = scalar_lea.vmem %s3, %s228
        %p230 = pneg %p115
        %p231 = pneg %p112
        %p232 = pneg %p141
        %p233 = pneg %p138
        %s234 = sand.u32 %s128, 1
        %s235 = scalar_lea.sflag [#allocation4], %s234
        %s236 = sand.u32 %s128, 1
        %s237 = smul.addr %s236, 16
        %s238 = scalar_lea.vmem [#allocation5], %s237
        %p239 = scmp.lt.s32.totalorder %s21, 2
        %s240 = scalar_select %p239, %s21, 2
        %s241 = scalar_lea.vmem %s2, %s240
        %p242 = scmp.lt.s32.totalorder %s21, 2
        %s243 = scalar_select %p242, %s21, 2
        %s244 = scalar_lea.vmem %s3, %s243
        %v245 = vld [vmem:[%s207] sm:$0xff]
        %v246 = vld [vmem:[%s207 + $0x8] sm:$0xff]
        %v247 = vld [vmem:[%s1] sm:$0xff]
        %v248 = vld [vmem:[%s1 + $0x8] sm:$0xff]
        %vm249 = vcmp.gt.f32.partialorder %v247, 0.0
        %vm250 = vcmp.gt.f32.partialorder %v248, 0.0
        %v251 = vsel %vm249, 1, 0
        %v252 = vsel %vm250, 1, 0
        %v253 = vcvt.s32.f32 %v251
        %v254 = vcvt.s32.f32 %v252
        %vm255 = vcmask 7168
        %v256 = vsel %vm255, %v253, 0.0
        %v257 = vsel %vm255, %v254, 0.0
        %v258 = vadd.f32 %v256, %v257
        %259 = vadd.xlane.f32.xlu0 %v258
        %v260 = vpop.xlane.xlu0 %259
        %v261 = vrot.slane %v260, 4
        %v262 = vadd.f32 %v260, %v261
        %v263 = vrot.slane %v262, 2
        %v264 = vadd.f32 %v262, %v263
        %v265 = vrot.slane %v264, 1
        %v266 = vadd.f32 %v264, %v265
        %s267 = vtos %v266
        %s268 = smax.f32 %s267, 1.0
        %v269 = vstv %s268
        %v270 = vrcp.pop %v269
        %v271 = vmul.f32 %v269, %v270
        %v272 = vsub.f32 1.0, %v271
        %v273 = vmul.f32 %v270, %v272
        %v274 = vadd.f32 %v270, %v273
        %vm275 = vweird.f32 %v269
        %vm276 = vweird.f32 %v270
        %vm277 = vmor %vm275, %vm276
        %v278 = vsel %vm277, %v270, %v274
        %v279 = vand.u32 2147483647, %v269
        %vm280 = vcmp.eq.f32.partialorder %v279, 8.507059e+37
        %v281 = vand.u32 %v269, 2147483648
        %v282 = vor.u32 1.1754944e-38, %v281
        %v283 = vsel %vm280, %v282, %v278
        %s284 = vtos %v283
        %286 = vset.pattern.permute.xlu0 0
        %287 = vperm.xlu0 %286, %v253
        %v288 = vpop.permute.xlu0 %287
        %291 = vset.pattern.permute.xlu0 0
        %292 = vperm.xlu0 %291, %v254
        %v293 = vpop.permute.xlu0 %292
        %v295 = vmul.f32 %v245, %v288
        %v296 = vmul.f32 %v246, %v293
        %v297 = vadd.f32 %v295, %v296
        %v298 = vrot.slane %v297, 4
        %v299 = vadd.f32 %v297, %v298
        %v300 = vrot.slane %v299, 2
        %v301 = vadd.f32 %v299, %v300
        %v302 = vrot.slane %v301, 1
        %v303 = vadd.f32 %v301, %v302
        %v304 = vstv %s284
        %v305 = vmul.f32 %v303, %v304
        %v306 = vsub.f32 %v245, %v305
        %v307 = vsub.f32 %v246, %v305
        %v308 = vmul.f32 %v306, %v288
        %v309 = vmul.f32 %v307, %v293
        %v310 = vmul.f32 %v308, %v308
        %v311 = vmul.f32 %v309, %v309
        %v312 = vadd.f32 %v310, %v311
        %v313 = vrot.slane %v312, 4
        %v314 = vadd.f32 %v312, %v313
        %v315 = vrot.slane %v314, 2
        %v316 = vadd.f32 %v314, %v315
        %v317 = vrot.slane %v316, 1
        %v318 = vadd.f32 %v316, %v317
        %v319 = vmul.f32 %v318, %v304
        %v320 = vld [vmem:[%s241] sm:$0x1]
        %v321 = vadd.f32 %v319, 1e-05
        %v322 = vrsqrt.pop %v321
        %v323 = vmul.f32 %v322, %v321
        %v324 = vmul.f32 %v323, %v322
        %v325 = vmul.f32 0.5, %v324
        %v326 = vsub.f32 1.5, %v325
        %v327 = vmul.f32 %v322, %v326
        %vm328 = vweird.f32 %v321
        %vm329 = vweird.f32 %v322
        %vm330 = vmor %vm328, %vm329
        %v331 = vsel %vm330, %v322, %v327
        %v332 = vmul.f32 %v320, %v331
        %v333 = vld [vmem:[%s244] sm:$0x1]
        %v335 = vperm.slane %v332, 0
        %v337 = vmul.f32 %v308, %v335
        %v338 = vmul.f32 %v309, %v335
        %v340 = vperm.slane %v333, 0
        %v342 = vmul.f32 %v340, %v288
        %v343 = vmul.f32 %v340, %v293
        %v344 = vadd.f32 %v337, %v342
        %v345 = vadd.f32 %v338, %v343
        %346 = vst [vmem:[%s238] sm:$0xff] %v344
        %347 = vst [vmem:[%s238 + $0x8] sm:$0xff] %v345
        %s348 = sand.u32 %s128, 1
        %s349 = scalar_lea.sflag [#allocation4], %s348
        %s350 = sand.u32 %s128, 1
        %s351 = smul.addr %s350, 16
        %s352 = scalar_lea.vmem [#allocation5], %s351
        // Predicated region
        $region41: #{tpu_custom_call.1} parent=35 // pred_check
          %p353 = pneg %p138
        $region42: #{tpu_custom_call.1} parent=35 // pred_check_branch
          %355 = sbr.rel (%p353) target = $region44
        $region43: #{tpu_custom_call.1} parent=35 // pred_region
          %357 = vsyncadd %s349, 0
          %s358 = smul.addr %s21, 8
          %s359 = scalar_lea.hbm %s4, %s358
          %s360 = sshll.u32 %s352, 4
          %s361 = int_to_ptr.vmem [resolvable:$true] %s360
          %s362 = sshll.u32 %s359, 4
          %s363 = int_to_ptr.hbm [resolvable:$true] %s362
          %368 = dma.vmem_to_hbm [thread:$0]  %s361, 256, %s363, %s349, 128, 384, 8
        $region44: #{tpu_custom_call.1} parent=35 // pred_fallthru
          _
      $region36: #{tpu_custom_call.1} parent=5 // pred_fallthru
        _
      %p369 = scmp.le.s32.totalorder 2, %s16
      // Predicated region
      $region45: #{tpu_custom_call.1} parent=5 // pred_check
        %p370 = pneg %p369
      $region46: #{tpu_custom_call.1} parent=5 // pred_check_branch
        %372 = sbr.rel (%p370) target = $region48
      $region47: #{tpu_custom_call.1} parent=5 // pred_region
        %s373 = ssub.s32 %s16, 2
        // Predicated region
        $region49: #{tpu_custom_call.1} parent=47 // pred_check
          %p374 = pneg %p144
        $region50: #{tpu_custom_call.1} parent=47 // pred_check_branch
          %376 = sbr.rel (%p374) target = $region52
        $region51: #{tpu_custom_call.1} parent=47 // pred_region
          %s377 = sand.u32 %s129, 1
          %s378 = scalar_lea.sflag [#allocation4], %s377
          %s379 = sand.u32 %s129, 1
          %s380 = smul.addr %s379, 16
          %s381 = scalar_lea.vmem [#allocation5], %s380
          %383 = dma.done %s378, 256
        $region52: #{tpu_custom_call.1} parent=47 // pred_fallthru
          _
      $region48: #{tpu_custom_call.1} parent=5 // pred_fallthru
        _
    $region6: #{tpu_custom_call.1} parent=1 // loop_footer
      %s20 = sadd.s32 1, %s16
    $region7: #{tpu_custom_call.1} parent=1 // loop_footer_branch
      %15 = sbr.rel target = $region3
    $region8: #{tpu_custom_call.1} parent=1 // loop_exit
      _
    %384 = vsyncpa [#allocation3], 1
    %s385 = scalar_lea.sflag [#allocation3], 1
    %386 = vsyncpa %s385, 1
    %387 = vsyncpa [#allocation4], 1
    %s388 = scalar_lea.sflag [#allocation4], 1
    %389 = vsyncpa %s388, 1

</llo_original>
